<compile_context>
chip_gen: v5e
topology: v5e:2x2
jax: 0.10.0
libtpu: 0.0.40
codegen_flags: <defaults>
</compile_context>

<pallas_src>
import functools

import jax
import jax.numpy as jnp
import numpy as np
from jax.experimental import pallas as pl
from jax.experimental.pallas import tpu as pltpu

_VMEM_LIMIT = 48 * 1024 * 1024    # scoped VMEM limit (< 64 MiB physical on v7x)
_VMEM_BUDGET = 30 * 1024 * 1024   # target double-buffered tile footprint
_TM_CAP = 256
_TK_CAP = 4608                    # full-K single-step for every ResNet50 layer
_TN_CAP = 256
_TN_CAP_SMALL_M = 1024            # wide-N tiles when M is tiny (stage 3/4)


# ----------------------------- Pallas kernels ------------------------------ #

def _mm_bn_single_kernel(x_ref, w_ref, bias_ref, o_ref, *, relu):
    # Single-K-step fast path: no accumulator scratch, no pl.when branches.
    y = jnp.dot(x_ref[...], w_ref[...], preferred_element_type=jnp.float32)
    y = y + bias_ref[...]
    if relu:
        y = jnp.maximum(y, 0.0)
    o_ref[...] = y.astype(o_ref.dtype)


def _mm_bn_add_relu_single_kernel(x_ref, w_ref, bias_ref, res_ref, o_ref):
    # Bottleneck tail, single K step: out = relu(dot + bias + residual).
    y = jnp.dot(x_ref[...], w_ref[...], preferred_element_type=jnp.float32)
    y = y + bias_ref[...] + res_ref[...].astype(jnp.float32)
    o_ref[...] = jnp.maximum(y, 0.0).astype(o_ref.dtype)


def _mm_bn_kernel(x_ref, w_ref, bias_ref, o_ref, acc_ref, *, relu):
    # Multi-K fallback (only used if a full-K tile would blow the VMEM budget).
    @pl.when(pl.program_id(2) == 0)
    def _():
        acc_ref[...] = jnp.zeros_like(acc_ref)

    acc_ref[...] += jnp.dot(x_ref[...], w_ref[...],
                            preferred_element_type=jnp.float32)

    @pl.when(pl.program_id(2) == pl.num_programs(2) - 1)
    def _():
        y = acc_ref[...] + bias_ref[...]
        if relu:
            y = jnp.maximum(y, 0.0)
        o_ref[...] = y.astype(o_ref.dtype)


def _mm_bn_add_relu_kernel(x_ref, w_ref, bias_ref, res_ref, o_ref, acc_ref):
    @pl.when(pl.program_id(2) == 0)
    def _():
        acc_ref[...] = jnp.zeros_like(acc_ref)

    acc_ref[...] += jnp.dot(x_ref[...], w_ref[...],
                            preferred_element_type=jnp.float32)

    @pl.when(pl.program_id(2) == pl.num_programs(2) - 1)
    def _():
        y = acc_ref[...] + bias_ref[...] + res_ref[...].astype(jnp.float32)
        o_ref[...] = jnp.maximum(y, 0.0).astype(o_ref.dtype)


# --------------------------- tiling / call builder -------------------------- #

def _round_up(x, m):
    return ((x + m - 1) // m) * m


def _pad2d(a, p0, p1):
    if p0 == 0 and p1 == 0:
        return a
    return jnp.pad(a, ((0, p0), (0, p1)))


def _pick_tile(dim, unit, cap):
    # Largest multiple of `unit` dividing `dim` (dim is a multiple of unit),
    # bounded by `cap`.
    best = unit
    for t in range(unit, min(dim, cap) + 1, unit):
        if dim % t == 0:
            best = t
    return best


def _footprint(tm, tk, tn, in_bytes, out_bytes, has_residual):
    # Double-buffered VMEM footprint of one grid step.
    total = 2 * tm * tk * in_bytes           # x tile
    total += 2 * tk * tn * in_bytes          # w tile
    total += 2 * tn * 4 * 2                  # bias tile (f32)
    total += 2 * tm * tn * out_bytes         # out tile
    if has_residual:
        total += 2 * tm * tn * in_bytes      # residual tile
    total += tm * tn * 4                     # f32 accumulator (fallback path)
    return total


def _select_tiles(M, K_pad, N_pad, in_bytes, out_bytes, has_residual):
    if M >= _TM_CAP:
        M_pad, tm = _round_up(M, _TM_CAP), _TM_CAP
    else:
        M_pad = _round_up(M, 16)             # bf16 packs 16 sublanes per vreg
        tm = M_pad
    tn_cap = _TN_CAP_SMALL_M if tm <= 64 else _TN_CAP
    if M_pad == tm and N_pad >= 256:
        # Keep >= 2 parallel (i, j) output tiles so the v7x megacore can split.
        tn_cap = min(tn_cap, max(128, N_pad // 2))
    tn = _pick_tile(N_pad, 128, tn_cap)
    tk = _pick_tile(K_pad, 128, _TK_CAP)     # prefer a single K step
    while tk > 128 and _footprint(tm, tk, tn, in_bytes, out_bytes,
                                  has_residual) > _VMEM_BUDGET:
        tk = _pick_tile(K_pad, 128, tk - 128)
    while tn > 128 and _footprint(tm, tk, tn, in_bytes, out_bytes,
                                  has_residual) > _VMEM_BUDGET:
        tn = _pick_tile(N_pad, 128, tn - 128)
    return M_pad, tm, tk, tn


@functools.lru_cache(maxsize=None)
def _build_mm_call(M, K, N, tm, tk, tn, relu, has_residual,
                   in_dtype_name, out_dtype_name):
    out_dtype = jnp.dtype(out_dtype_name)
    in_bytes = jnp.dtype(in_dtype_name).itemsize
    out_bytes = out_dtype.itemsize
    single_k = (tk == K)

    cost = pl.CostEstimate(
        flops=2 * M * K * N,
        transcendentals=0,
        bytes_accessed=(M * K + K * N) * in_bytes + M * N * out_bytes
        + (M * N * in_bytes if has_residual else 0) + N * 4)

    if single_k:
        grid = (M // tm, N // tn)
        in_specs = [pl.BlockSpec((tm, tk), lambda i, j: (i, 0)),
                    pl.BlockSpec((tk, tn), lambda i, j: (0, j)),
                    pl.BlockSpec((1, tn), lambda i, j: (0, j))]
        o_spec = pl.BlockSpec((tm, tn), lambda i, j: (i, j))
        if has_residual:
            in_specs.append(pl.BlockSpec((tm, tn), lambda i, j: (i, j)))
            kern = _mm_bn_add_relu_single_kernel
        else:
            kern = functools.partial(_mm_bn_single_kernel, relu=relu)
        scratch = []
        semantics = ("parallel", "parallel")
    else:
        grid = (M // tm, N // tn, K // tk)
        in_specs = [pl.BlockSpec((tm, tk), lambda i, j, k: (i, k)),
                    pl.BlockSpec((tk, tn), lambda i, j, k: (k, j)),
                    pl.BlockSpec((1, tn), lambda i, j, k: (0, j))]
        o_spec = pl.BlockSpec((tm, tn), lambda i, j, k: (i, j))
        if has_residual:
            # Residual tile resident across K (index_map independent of k).
            in_specs.append(pl.BlockSpec((tm, tn), lambda i, j, k: (i, j)))
            kern = _mm_bn_add_relu_kernel
        else:
            kern = functools.partial(_mm_bn_kernel, relu=relu)
        scratch = [pltpu.VMEM((tm, tn), jnp.float32)]
        semantics = ("parallel", "parallel", "arbitrary")

    return pl.pallas_call(
        kern,
        out_shape=jax.ShapeDtypeStruct((M, N), out_dtype),
        grid_spec=pltpu.PrefetchScalarGridSpec(
            num_scalar_prefetch=0,
            grid=grid,
            in_specs=in_specs,
            out_specs=o_spec,
            scratch_shapes=scratch,
        ),
        compiler_params=pltpu.CompilerParams(
            dimension_semantics=semantics,
            vmem_limit_bytes=_VMEM_LIMIT,
        ),
        cost_estimate=cost,
    )


def matmul_bn_act(x, w, bias, residual=None, relu=True,
                  out_dtype=jnp.bfloat16, compute_dtype=jnp.bfloat16):
    """Fused (x @ w) + bias [+ residual] [-> relu], f32 accumulation.

    `w` may be pre-padded (K/N rounded up to multiples of 128); `bias`
    carries the true output-channel count in its last dim.
    """
    M, K = x.shape
    Kw, Nw = w.shape
    n_out = bias.shape[1]
    assert Kw >= K and Nw >= n_out, (x.shape, w.shape, bias.shape)
    K_pad = _round_up(Kw, 128)
    N_pad = _round_up(Nw, 128)

    in_bytes = jnp.dtype(compute_dtype).itemsize
    out_bytes = jnp.dtype(out_dtype).itemsize
    M_pad, tm, tk, tn = _select_tiles(M, K_pad, N_pad, in_bytes, out_bytes,
                                      residual is not None)

    x_p = _pad2d(x.astype(compute_dtype), M_pad - M, K_pad - K)
    w_p = _pad2d(w.astype(compute_dtype), K_pad - Kw, N_pad - Nw)
    b_p = _pad2d(bias.astype(jnp.float32), 0, N_pad - n_out)
    args = [x_p, w_p, b_p]
    if residual is not None:
        r_p = _pad2d(residual.astype(compute_dtype),
                     M_pad - residual.shape[0], N_pad - residual.shape[1])
        args.append(r_p)

    call = _build_mm_call(M_pad, K_pad, N_pad, tm, tk, tn, bool(relu),
                          residual is not None,
                          jnp.dtype(compute_dtype).name,
                          jnp.dtype(out_dtype).name)
    out = call(*args)
    return out[:M, :n_out]


# ------------------------------- JAX glue ---------------------------------- #

def _im2col(x, kh, kw, stride, pad):
    # x: (B, H, W, C) -> (B*oh*ow, kh*kw*C), column order (kh, kw, C).
    # 1x1 convs reduce to a strided slice + reshape (no blow-up).
    # TODO(synk): for 3x3/7x7 convs the kh*kw-wide im2col is still materialized
    # in HBM; a kh*kw tap grid axis with shifted-window index_maps would remove
    # that traffic (matters more at higher resolution / batch than 64x64 b=2).
    if pad:
        x = jnp.pad(x, ((0, 0), (pad, pad), (pad, pad), (0, 0)))
    B, H, W, C = x.shape
    oh = (H - kh) // stride + 1
    ow = (W - kw) // stride + 1
    if kh == 1 and kw == 1:
        cols = x[:, ::stride, ::stride, :][:, :oh, :ow, :]
        return cols.reshape(B * oh * ow, C), oh, ow
    cols = []
    for i in range(kh):
        for j in range(kw):
            cols.append(x[:, i:i + stride * oh:stride, j:j + stride * ow:stride, :])
    cols = jnp.concatenate(cols, axis=-1)
    return cols.reshape(B * oh * ow, kh * kw * C), oh, ow


def conv_bn(x, conv, kh, kw, stride, pad, relu=True, residual=None):
    """conv (im2col) + folded-BN bias (+ residual) (+ relu), Pallas hot path."""
    B = x.shape[0]
    cols, oh, ow = _im2col(x, kh, kw, stride, pad)
    cout = conv['bias'].shape[1]
    res = None if residual is None else residual.reshape(B * oh * ow, cout)
    out = matmul_bn_act(cols, conv['wm'], conv['bias'],
                        residual=res, relu=relu, out_dtype=jnp.bfloat16)
    return out.reshape(B, oh, ow, cout)


def _maxpool_3x3_s2(x):
    # Negligible compute vs. the conv matmuls -> plain lax glue (fused by jit).
    neg_inf = jnp.array(-jnp.inf, dtype=x.dtype)
    return jax.lax.reduce_window(x, neg_inf, jax.lax.max,
                                 (1, 3, 3, 1), (1, 2, 2, 1),
                                 [(0, 0), (1, 1), (1, 1), (0, 0)])


# --------------------------- parameter creation ----------------------------- #

_STAGE_CFG = [(64, 3, 1), (128, 4, 2), (256, 6, 2), (512, 3, 2)]  # ResNet50


def _init_conv_weight(key, cout, cin, kh, kw):
    std = (2.0 / (cin * kh * kw)) ** 0.5
    return jax.random.normal(key, (cout, cin, kh, kw), jnp.float32) * std


def _init_bn(key, c):
    # Inference-mode BN folded into per-channel scale/bias.
    k1, k2, k3, k4 = jax.random.split(key, 4)
    gamma = 1.0 + 0.1 * jax.random.normal(k1, (c,), jnp.float32)
    beta = 0.1 * jax.random.normal(k2, (c,), jnp.float32)
    mean = 0.1 * jax.random.normal(k3, (c,), jnp.float32)
    var = 1.0 + 0.1 * jax.random.uniform(k4, (c,), jnp.float32)
    eps = 1e-5
    scale = gamma / jnp.sqrt(var + eps)
    bias = beta - mean * scale
    return scale.reshape(1, c), bias.reshape(1, c)


def _make_conv(key_it, cout, cin, kh, kw):
    w = _init_conv_weight(next(key_it), cout, cin, kh, kw)
    # PyTorch conv weight (Cout, Cin, kh, kw) -> im2col matrix (kh*kw*Cin, Cout)
    wm = jnp.transpose(w, (2, 3, 1, 0)).reshape(kh * kw * cin, cout)
    scale, bias = _init_bn(next(key_it), cout)
    # Fold BN scale into the weights; kernel epilogue only adds bias.
    wm = wm * scale
    K, N = wm.shape
    # Pre-pad weights to the tile grid ONCE at init (avoids per-forward XLA pad
    # copies of up-to-~5 MB weight matrices; the forward is weight-DMA bound).
    # Bias stays unpadded so its shape carries the true channel count.
    # TODO(synk): int8 (v5e/v6e) / fp8 (v7x) weight storage would halve the
    # dominant weight HBM stream; kept bf16 here to preserve numerics.
    wm = _pad2d(wm, _round_up(K, 128) - K, _round_up(N, 128) - N)
    return {'wm': wm.astype(jnp.bfloat16), 'bias': bias}


def init_resnet50_params(key, hash_bit):
    # TODO(synk): pretrained ImageNet weights not loadable here; deterministic
    # synthetic init with identical shapes instead.
    key_it = iter(jax.random.split(key, 256))
    p = {'conv1': _make_conv(key_it, 64, 3, 7, 7)}
    cin = 64
    layers = []
    for width, nblocks, _ in _STAGE_CFG:
        blocks = []
        for b in range(nblocks):
            blk = {
                'conv1': _make_conv(key_it, width, cin, 1, 1),
                'conv2': _make_conv(key_it, width, width, 3, 3),
                'conv3': _make_conv(key_it, width * 4, width, 1, 1),
            }
            if b == 0:
                blk['down'] = _make_conv(key_it, width * 4, cin, 1, 1)
            blocks.append(blk)
            cin = width * 4
        layers.append(blocks)
    p['layers'] = layers
    # hash_layer = nn.Linear(2048, hash_bit): weight ~ N(0, 0.01), bias = 0.
    # Stored pre-transposed (2048, hash_bit) in f32 (PyTorch fc runs fp32).
    hw = 0.01 * jax.random.normal(next(key_it), (hash_bit, 2048), jnp.float32)
    p['hash_w'] = jnp.transpose(hw)
    p['hash_b'] = jnp.zeros((1, hash_bit), jnp.float32)
    return p


# ------------------------------- forward ----------------------------------- #

def _bottleneck(x, blk, stride):
    if 'down' in blk:
        identity = conv_bn(x, blk['down'], 1, 1, stride=stride, pad=0, relu=False)
    else:
        identity = x
    out = conv_bn(x, blk['conv1'], 1, 1, stride=1, pad=0, relu=True)
    out = conv_bn(out, blk['conv2'], 3, 3, stride=stride, pad=1, relu=True)
    # residual add + final relu fused into the last Pallas matmul kernel
    out = conv_bn(out, blk['conv3'], 1, 1, stride=1, pad=0, residual=identity)
    return out


def resnet_forward(params, x_nchw):
    x = jnp.transpose(x_nchw, (0, 2, 3, 1)).astype(jnp.bfloat16)   # NCHW -> NHWC
    x = conv_bn(x, params['conv1'], 7, 7, stride=2, pad=3, relu=True)
    x = _maxpool_3x3_s2(x)
    for blocks, (_, _, stage_stride) in zip(params['layers'], _STAGE_CFG):
        for b, blk in enumerate(blocks):
            s = stage_stride if b == 0 else 1
            x = _bottleneck(x, blk, s)
    feat = jnp.mean(x.astype(jnp.float32), axis=(1, 2))            # (B, 2048)
    # Final hash Linear in f32 (matches PyTorch's fp32 fc).
    y = matmul_bn_act(feat, params['hash_w'], params['hash_b'],
                      relu=False, out_dtype=jnp.float32,
                      compute_dtype=jnp.float32)
    return y                                                       # (B, hash_bit)


# Single jit over the whole forward: XLA fuses the im2col / pad / reshape glue
# and schedules the ~53 pallas_calls back-to-back (no per-conv dispatch).
resnet_forward_jit = jax.jit(resnet_forward)


# --------------------------------- main ------------------------------------ #

if __name__ == "__main__":
    key = jax.random.PRNGKey(0)
    kp, kx, kc = jax.random.split(key, 3)

    hash_bit = 32
    params = init_resnet50_params(kp, hash_bit)
    x = jax.random.normal(kx, (2, 3, 64, 64), jnp.float32)         # NCHW input

    # Small self-check: fused Pallas GEMM vs plain jnp (bf16 matmul, f32 acc).
    a = jax.random.normal(kc, (128, 256), jnp.float32)
    b = jax.random.normal(jax.random.fold_in(kc, 1), (256, 64), jnp.float32)
    bi = jnp.linspace(-0.1, 0.1, 64, dtype=jnp.float32).reshape(1, 64)
    got = jax.block_until_ready(matmul_bn_act(a, b, bi, relu=True))
    want = jnp.maximum(
        jnp.dot(a.astype(jnp.bfloat16), b.astype(jnp.bfloat16),
                preferred_element_type=jnp.float32) + bi, 0.0)
    np.testing.assert_allclose(np.asarray(got, dtype=np.float32),
                               np.asarray(want, dtype=np.float32),
                               rtol=2e-2, atol=2e-2)

    y = jax.block_until_ready(resnet_forward_jit(params, x))
    assert y.shape == (2, hash_bit), y.shape
    assert bool(jnp.all(jnp.isfinite(y)))
    print("KERNEL_OK")
</pallas_src>

<mosaic_0001>
module attributes {stable_mosaic.version = 11 : i64} {
  func.func @_mm_bn_single_kernel(%arg0: i32, %arg1: i32, %arg2: memref<128x256xbf16, #tpu.memory_space<vmem>>, %arg3: memref<256x128xbf16, #tpu.memory_space<vmem>>, %arg4: memref<1x128xf32, #tpu.memory_space<vmem>>, %arg5: memref<128x128xbf16, #tpu.memory_space<vmem>>) attributes {dimension_semantics = [#tpu.dimension_semantics<parallel>, #tpu.dimension_semantics<parallel>], iteration_bounds = array<i64: 1, 1>, scalar_prefetch = 0 : i64, scratch_operands = 0 : i64, tpu.core_type = #tpu.core_type<tc>, window_params = [{transform_indices = @transform_0, window_bounds = array<i64: 128, 256>}, {transform_indices = @transform_1, window_bounds = array<i64: 256, 128>}, {transform_indices = @transform_2, window_bounds = array<i64: 1, 128>}, {transform_indices = @transform_3, window_bounds = array<i64: 128, 128>}]} {
    %c0 = arith.constant 0 : index
    %c0_0 = arith.constant 0 : index
    %0 = vector.load %arg2[%c0, %c0_0] : memref<128x256xbf16, #tpu.memory_space<vmem>>, vector<128x256xbf16>
    %c0_1 = arith.constant 0 : index
    %c0_2 = arith.constant 0 : index
    %1 = vector.load %arg3[%c0_1, %c0_2] : memref<256x128xbf16, #tpu.memory_space<vmem>>, vector<256x128xbf16>
    %cst = arith.constant dense<0.000000e+00> : vector<128x128xf32>
    %2 = tpu.matmul %0, %1, %cst {dimension_numbers = #tpu.dot_dimension_numbers<[1], [0], [0], [1], [0, 0, 1, 1], [], []>} : vector<128x256xbf16>, vector<256x128xbf16>, vector<128x128xf32> -> vector<128x128xf32>
    %c0_3 = arith.constant 0 : index
    %c0_4 = arith.constant 0 : index
    %3 = vector.load %arg4[%c0_3, %c0_4] : memref<1x128xf32, #tpu.memory_space<vmem>>, vector<1x128xf32>
    %4 = vector.broadcast %3 : vector<1x128xf32> to vector<128x128xf32>
    %5 = arith.addf %2, %4 : vector<128x128xf32>
    %cst_5 = arith.constant 0.000000e+00 : f32
    %6 = vector.broadcast %cst_5 : f32 to vector<128x128xf32>
    %7 = arith.maximumf %5, %6 : vector<128x128xf32>
    %8 = arith.truncf %7 : vector<128x128xf32> to vector<128x128xbf16>
    %c0_6 = arith.constant 0 : index
    %c0_7 = arith.constant 0 : index
    %9 = vector.load %arg5[%c0_6, %c0_7] : memref<128x128xbf16, #tpu.memory_space<vmem>>, vector<128x128xbf16>
    tpu.vector_store %arg5[%c0_6, %c0_7], %8 {strides = array<i32>} : memref<128x128xbf16, #tpu.memory_space<vmem>>, vector<128x128xbf16>,
    return
  }
  func.func @transform_0(%arg0: i32, %arg1: i32) -> (i32, i32) {
    %c0_i32 = arith.constant 0 : i32
    %c0_i32_0 = arith.constant 0 : i32
    return %arg0, %c0_i32 : i32, i32
  }
  func.func @transform_1(%arg0: i32, %arg1: i32) -> (i32, i32) {
    %c0_i32 = arith.constant 0 : i32
    %c0_i32_0 = arith.constant 0 : i32
    return %c0_i32, %arg1 : i32, i32
  }
  func.func @transform_2(%arg0: i32, %arg1: i32) -> (i32, i32) {
    %c0_i32 = arith.constant 0 : i32
    %c0_i32_0 = arith.constant 0 : i32
    return %c0_i32, %arg1 : i32, i32
  }
  func.func @transform_3(%arg0: i32, %arg1: i32) -> (i32, i32) {
    %c0_i32 = arith.constant 0 : i32
    return %arg0, %arg1 : i32, i32
  }
}

</mosaic_0001>

<llo_original>
// kernel: tpu_custom_call.1
$region0: #{tpu_custom_call.1}
  #allocation0 [shape = 'u32[]', space=smem, size = 0x4, offset = 0x4, fixed_abs, tag = 'smem constant byte address 0x4 - core index']
  #allocation1 [shape = 'u32[72,128]{1,0:T(1,128)}', space=vmem, size = 0x9000, scoped, tag = 'internal scratch']
  %s0 = inlined_call_operand.hbm [shape: bf16[128,256], index: 0, kind: input, shape index: {}]
  %s1 = inlined_call_operand.hbm [shape: bf16[256,128], index: 1, kind: input, shape index: {}]
  %s2 = inlined_call_operand.vmem [shape: f32[1,128], index: 2, kind: input, shape index: {}]
  %s3 = inlined_call_operand.hbm [shape: bf16[128,128], index: 3, kind: output, shape index: {}]
  %s4 = sld [smem:[#allocation0]]
  $region30: #{tpu_custom_call.1} parent=0
    _
  %s6 = ssub.s32 1, %s4
  %s7 = scalar_select 0, %s6, %s4
  $region1: #{tpu_custom_call.1} parent=0
    #allocation2 [shape = 'u8[65536]{0}', space=vmem, size = 0x10000, scoped, tag = 'input window, operand 0, single buffered']
    #allocation3 [shape = 's32[1]{0}', space=sflag, size = 0x4, scoped, tag = 'scoped memory for tpu_custom_call.1']
    #allocation4 [shape = 's32[1]{0}', space=sflag, size = 0x4, scoped, tag = 'scoped memory for tpu_custom_call.1']
    #allocation5 [shape = 'u8[65536]{0}', space=vmem, size = 0x10000, scoped, tag = 'input window, operand 1, single buffered']
    #allocation6 [shape = 's32[1]{0}', space=sflag, size = 0x4, scoped, tag = 'scoped memory for tpu_custom_call.1']
    #allocation7 [shape = 'u8[32768]{0}', space=vmem, size = 0x8000, scoped, tag = 'output window, operand 0, single buffered']
    %8 = vsyncpa [#allocation3], 0
    %9 = vsyncpa [#allocation6], 0
    %10 = vsyncpa [#allocation4], 0
    // Predicated region
    $region2: #{tpu_custom_call.1} parent=1 // pred_check
      _
    $region3: #{tpu_custom_call.1} parent=1 // pred_check_branch
      %12 = sbr.rel (0) target = $region5
    $region4: #{tpu_custom_call.1} parent=1 // pred_region
      %14 = vsyncadd [#allocation3], 0
      %s15 = sshll.u32 %s0, 4
      %s16 = int_to_ptr.hbm [resolvable:$true] %s15
      %s17 = sshll.u32 [#allocation2], 4
      %s18 = int_to_ptr.vmem [resolvable:$true] %s17
      %23 = dma.hbm_to_vmem [thread:$0]  %s16, 2048, %s18, [#allocation3], 128, 128, 8
    $region5: #{tpu_custom_call.1} parent=1 // pred_fallthru
      _
    // Predicated region
    $region6: #{tpu_custom_call.1} parent=1 // pred_check
      _
    $region7: #{tpu_custom_call.1} parent=1 // pred_check_branch
      %25 = sbr.rel (0) target = $region9
    $region8: #{tpu_custom_call.1} parent=1 // pred_region
      %27 = vsyncadd [#allocation6], 0
      %s28 = sshll.u32 %s1, 4
      %s29 = int_to_ptr.hbm [resolvable:$true] %s28
      %s30 = sshll.u32 [#allocation5], 4
      %s31 = int_to_ptr.vmem [resolvable:$true] %s30
      %36 = dma.hbm_to_vmem [thread:$0]  %s29, 2048, %s31, [#allocation6], 64, 64, 4
    $region9: #{tpu_custom_call.1} parent=1 // pred_fallthru
      _
    // Predicated region
    $region10: #{tpu_custom_call.1} parent=1 // pred_check
      _
    $region11: #{tpu_custom_call.1} parent=1 // pred_check_branch
      %38 = sbr.rel (0) target = $region13
    $region12: #{tpu_custom_call.1} parent=1 // pred_region
      _
    $region13: #{tpu_custom_call.1} parent=1 // pred_fallthru
      _
    // Predicated region
    $region14: #{tpu_custom_call.1} parent=1 // pred_check
      _
    $region15: #{tpu_custom_call.1} parent=1 // pred_check_branch
      %40 = sbr.rel (0) target = $region17
    $region16: #{tpu_custom_call.1} parent=1 // pred_region
      %42 = dma.done [#allocation3], 2048
    $region17: #{tpu_custom_call.1} parent=1 // pred_fallthru
      _
    // Predicated region
    $region18: #{tpu_custom_call.1} parent=1 // pred_check
      _
    $region19: #{tpu_custom_call.1} parent=1 // pred_check_branch
      %44 = sbr.rel (0) target = $region21
    $region20: #{tpu_custom_call.1} parent=1 // pred_region
      %46 = dma.done [#allocation6], 2048
    $region21: #{tpu_custom_call.1} parent=1 // pred_fallthru
      _
    %v47 = vld [vmem:[#allocation2] sm:$0xff]
    %v48 = vld [vmem:[#allocation2 + $0x8] sm:$0xff]
    %v49 = vld [vmem:[#allocation2 + $0x10] sm:$0xff]
    %v50 = vld [vmem:[#allocation2 + $0x18] sm:$0xff]
    %v51 = vld [vmem:[#allocation2 + $0x20] sm:$0xff]
    %v52 = vld [vmem:[#allocation2 + $0x28] sm:$0xff]
    %v53 = vld [vmem:[#allocation2 + $0x30] sm:$0xff]
    %v54 = vld [vmem:[#allocation2 + $0x38] sm:$0xff]
    %v55 = vld [vmem:[#allocation2 + $0x40] sm:$0xff]
    %v56 = vld [vmem:[#allocation2 + $0x48] sm:$0xff]
    %v57 = vld [vmem:[#allocation2 + $0x50] sm:$0xff]
    %v58 = vld [vmem:[#allocation2 + $0x58] sm:$0xff]
    %v59 = vld [vmem:[#allocation2 + $0x60] sm:$0xff]
    %v60 = vld [vmem:[#allocation2 + $0x68] sm:$0xff]
    %v61 = vld [vmem:[#allocation2 + $0x70] sm:$0xff]
    %v62 = vld [vmem:[#allocation2 + $0x78] sm:$0xff]
    %v63 = vld [vmem:[#allocation5] sm:$0xf]
    %v64 = vld [vmem:[#allocation5 + $0x4] sm:$0xf]
    %v65 = vld [vmem:[#allocation5 + $0x8] sm:$0xf]
    %v66 = vld [vmem:[#allocation5 + $0xc] sm:$0xf]
    %v67 = vld [vmem:[#allocation5 + $0x10] sm:$0xf]
    %v68 = vld [vmem:[#allocation5 + $0x14] sm:$0xf]
    %v69 = vld [vmem:[#allocation5 + $0x18] sm:$0xf]
    %v70 = vld [vmem:[#allocation5 + $0x1c] sm:$0xf]
    %v71 = vld [vmem:[#allocation5 + $0x20] sm:$0xf]
    %v72 = vld [vmem:[#allocation5 + $0x24] sm:$0xf]
    %v73 = vld [vmem:[#allocation5 + $0x28] sm:$0xf]
    %v74 = vld [vmem:[#allocation5 + $0x2c] sm:$0xf]
    %v75 = vld [vmem:[#allocation5 + $0x30] sm:$0xf]
    %v76 = vld [vmem:[#allocation5 + $0x34] sm:$0xf]
    %v77 = vld [vmem:[#allocation5 + $0x38] sm:$0xf]
    %v78 = vld [vmem:[#allocation5 + $0x3c] sm:$0xf]
    %v79 = vld [vmem:[#allocation5 + $0x40] sm:$0xf]
    %v80 = vld [vmem:[#allocation5 + $0x44] sm:$0xf]
    %v81 = vld [vmem:[#allocation5 + $0x48] sm:$0xf]
    %v82 = vld [vmem:[#allocation5 + $0x4c] sm:$0xf]
    %v83 = vld [vmem:[#allocation5 + $0x50] sm:$0xf]
    %v84 = vld [vmem:[#allocation5 + $0x54] sm:$0xf]
    %v85 = vld [vmem:[#allocation5 + $0x58] sm:$0xf]
    %v86 = vld [vmem:[#allocation5 + $0x5c] sm:$0xf]
    %v87 = vld [vmem:[#allocation5 + $0x60] sm:$0xf]
    %v88 = vld [vmem:[#allocation5 + $0x64] sm:$0xf]
    %v89 = vld [vmem:[#allocation5 + $0x68] sm:$0xf]
    %v90 = vld [vmem:[#allocation5 + $0x6c] sm:$0xf]
    %v91 = vld [vmem:[#allocation5 + $0x70] sm:$0xf]
    %v92 = vld [vmem:[#allocation5 + $0x74] sm:$0xf]
    %v93 = vld [vmem:[#allocation5 + $0x78] sm:$0xf]
    %v94 = vld [vmem:[#allocation5 + $0x7c] sm:$0xf]
    %v95 = vld [vmem:[%s2] sm:$0x1]
    %v97 = vperm.slane %v95, 0
    %v115 = vunpack.c.l.b16 %v47
    %v116 = vunpack.c.h.b16 %v47
    %v117 = vunpack.c.l.b16 %v48
    %v118 = vunpack.c.h.b16 %v48
    %v119 = vunpack.c.l.b16 %v49
    %v120 = vunpack.c.h.b16 %v49
    %v121 = vunpack.c.l.b16 %v50
    %v122 = vunpack.c.h.b16 %v50
    %v123 = vunpack.c.l.b16 %v51
    %v124 = vunpack.c.h.b16 %v51
    %v125 = vunpack.c.l.b16 %v52
    %v126 = vunpack.c.h.b16 %v52
    %v127 = vunpack.c.l.b16 %v53
    %v128 = vunpack.c.h.b16 %v53
    %v129 = vunpack.c.l.b16 %v54
    %v130 = vunpack.c.h.b16 %v54
    %v131 = vunpack.c.l.b16 %v55
    %v132 = vunpack.c.h.b16 %v55
    %v133 = vunpack.c.l.b16 %v56
    %v134 = vunpack.c.h.b16 %v56
    %v135 = vunpack.c.l.b16 %v57
    %v136 = vunpack.c.h.b16 %v57
    %v137 = vunpack.c.l.b16 %v58
    %v138 = vunpack.c.h.b16 %v58
    %v139 = vunpack.c.l.b16 %v59
    %v140 = vunpack.c.h.b16 %v59
    %v141 = vunpack.c.l.b16 %v60
    %v142 = vunpack.c.h.b16 %v60
    %v143 = vunpack.c.l.b16 %v61
    %v144 = vunpack.c.h.b16 %v61
    %v145 = vunpack.c.l.b16 %v62
    %v146 = vunpack.c.h.b16 %v62
    %v147 = vpack.c.b16 %v117, %v115
    %v148 = vpack.c.b16 %v118, %v116
    %v149 = vpack.c.b16 %v121, %v119
    %v150 = vpack.c.b16 %v122, %v120
    %v151 = vpack.c.b16 %v125, %v123
    %v152 = vpack.c.b16 %v126, %v124
    %v153 = vpack.c.b16 %v129, %v127
    %v154 = vpack.c.b16 %v130, %v128
    %v155 = vpack.c.b16 %v133, %v131
    %v156 = vpack.c.b16 %v134, %v132
    %v157 = vpack.c.b16 %v137, %v135
    %v158 = vpack.c.b16 %v138, %v136
    %v159 = vpack.c.b16 %v141, %v139
    %v160 = vpack.c.b16 %v142, %v140
    %v161 = vpack.c.b16 %v145, %v143
    %v162 = vpack.c.b16 %v146, %v144
    %v211 = vunpack.c.l.b16 %v63
    %v212 = vunpack.c.l.b16 %v64
    %v213 = vunpack.c.l.b16 %v65
    %v214 = vunpack.c.l.b16 %v66
    %v215 = vunpack.c.l.b16 %v67
    %v216 = vunpack.c.l.b16 %v68
    %v217 = vunpack.c.l.b16 %v69
    %v218 = vunpack.c.l.b16 %v70
    %v219 = vunpack.c.l.b16 %v71
    %v220 = vunpack.c.l.b16 %v72
    %v221 = vunpack.c.l.b16 %v73
    %v222 = vunpack.c.l.b16 %v74
    %v223 = vunpack.c.l.b16 %v75
    %v224 = vunpack.c.l.b16 %v76
    %v225 = vunpack.c.l.b16 %v77
    %v226 = vunpack.c.l.b16 %v78
    %v227 = vunpack.c.l.b16 %v79
    %v228 = vunpack.c.l.b16 %v80
    %v229 = vunpack.c.l.b16 %v81
    %v230 = vunpack.c.l.b16 %v82
    %v231 = vunpack.c.l.b16 %v83
    %v232 = vunpack.c.l.b16 %v84
    %v233 = vunpack.c.l.b16 %v85
    %v234 = vunpack.c.l.b16 %v86
    %v235 = vunpack.c.l.b16 %v87
    %v236 = vunpack.c.l.b16 %v88
    %v237 = vunpack.c.l.b16 %v89
    %v238 = vunpack.c.l.b16 %v90
    %v239 = vunpack.c.l.b16 %v91
    %v240 = vunpack.c.l.b16 %v92
    %v241 = vunpack.c.l.b16 %v93
    %v242 = vunpack.c.l.b16 %v94
    %v243 = vpack.c.b16 %v212, %v211
    %v244 = vpack.c.b16 %v214, %v213
    %v245 = vpack.c.b16 %v216, %v215
    %v246 = vpack.c.b16 %v218, %v217
    %v247 = vpack.c.b16 %v220, %v219
    %v248 = vpack.c.b16 %v222, %v221
    %v249 = vpack.c.b16 %v224, %v223
    %v250 = vpack.c.b16 %v226, %v225
    %v251 = vpack.c.b16 %v228, %v227
    %v252 = vpack.c.b16 %v230, %v229
    %v253 = vpack.c.b16 %v232, %v231
    %v254 = vpack.c.b16 %v234, %v233
    %v255 = vpack.c.b16 %v236, %v235
    %v256 = vpack.c.b16 %v238, %v237
    %v257 = vpack.c.b16 %v240, %v239
    %v258 = vpack.c.b16 %v242, %v241
    %275 = vmatpush.bf16.msra.mxu0 %v250
    %276 = vmatpush.bf16.msra.mxu0 %v249
    %277 = vmatpush.bf16.msra.mxu0 %v248
    %278 = vmatpush.bf16.msra.mxu0 %v247
    %279 = vmatpush.bf16.msra.mxu0 %v246
    %280 = vmatpush.bf16.msra.mxu0 %v245
    %281 = vmatpush.bf16.msra.mxu0 %v244
    %282 = vmatpush.bf16.msra.mxu0 %v243
    %283 = vmatmul.bf16.gmra.mxu0 %v147
    %v284 = vpop.f32.mrf.mxu0
    %v285 = vadd.f32 %v97, %v284
    %v286 = vpop.f32.mrf.mxu0
    %v287 = vadd.f32 %v97, %v286
    %288 = vmatmul.bf16.gmra.mxu0 %v149
    %v289 = vpop.f32.mrf.mxu0
    %v290 = vadd.f32 %v97, %v289
    %v291 = vpop.f32.mrf.mxu0
    %v292 = vadd.f32 %v97, %v291
    %293 = vmatmul.bf16.gmra.mxu0 %v151
    %v294 = vpop.f32.mrf.mxu0
    %v295 = vadd.f32 %v97, %v294
    %v296 = vpop.f32.mrf.mxu0
    %v297 = vadd.f32 %v97, %v296
    %298 = vmatmul.bf16.gmra.mxu0 %v153
    %v299 = vpop.f32.mrf.mxu0
    %v300 = vadd.f32 %v97, %v299
    %v301 = vpop.f32.mrf.mxu0
    %v302 = vadd.f32 %v97, %v301
    %303 = vmatmul.bf16.gmra.mxu0 %v155
    %v304 = vpop.f32.mrf.mxu0
    %v305 = vadd.f32 %v97, %v304
    %v306 = vpop.f32.mrf.mxu0
    %v307 = vadd.f32 %v97, %v306
    %308 = vmatmul.bf16.gmra.mxu0 %v157
    %v309 = vpop.f32.mrf.mxu0
    %v310 = vadd.f32 %v97, %v309
    %v311 = vpop.f32.mrf.mxu0
    %v312 = vadd.f32 %v97, %v311
    %313 = vmatmul.bf16.gmra.mxu0 %v159
    %v314 = vpop.f32.mrf.mxu0
    %v315 = vadd.f32 %v97, %v314
    %v316 = vpop.f32.mrf.mxu0
    %v317 = vadd.f32 %v97, %v316
    %318 = vmatmul.bf16.gmra.mxu0 %v161
    %v319 = vpop.f32.mrf.mxu0
    %v320 = vadd.f32 %v97, %v319
    %v321 = vpop.f32.mrf.mxu0
    %v322 = vadd.f32 %v97, %v321
    %323 = vdwg.mxu0
    %324 = vmatpush.bf16.msra.mxu0 %v258
    %325 = vmatpush.bf16.msra.mxu0 %v257
    %326 = vmatpush.bf16.msra.mxu0 %v256
    %327 = vmatpush.bf16.msra.mxu0 %v255
    %328 = vmatpush.bf16.msra.mxu0 %v254
    %329 = vmatpush.bf16.msra.mxu0 %v253
    %330 = vmatpush.bf16.msra.mxu0 %v252
    %331 = vmatpush.bf16.msra.mxu0 %v251
    %332 = vmatmul.bf16.gmra.mxu0 %v148
    %v333 = vpop.f32.mrf.mxu0
    %v334 = vadd.f32 %v285, %v333
    %v335 = vpop.f32.mrf.mxu0
    %v336 = vadd.f32 %v287, %v335
    %337 = vmatmul.bf16.gmra.mxu0 %v150
    %v338 = vpop.f32.mrf.mxu0
    %v339 = vadd.f32 %v290, %v338
    %v340 = vpop.f32.mrf.mxu0
    %v341 = vadd.f32 %v292, %v340
    %342 = vmatmul.bf16.gmra.mxu0 %v152
    %v343 = vpop.f32.mrf.mxu0
    %v344 = vadd.f32 %v295, %v343
    %v345 = vpop.f32.mrf.mxu0
    %v346 = vadd.f32 %v297, %v345
    %347 = vmatmul.bf16.gmra.mxu0 %v154
    %v348 = vpop.f32.mrf.mxu0
    %v349 = vadd.f32 %v300, %v348
    %v350 = vpop.f32.mrf.mxu0
    %v351 = vadd.f32 %v302, %v350
    %352 = vmatmul.bf16.gmra.mxu0 %v156
    %v353 = vpop.f32.mrf.mxu0
    %v354 = vadd.f32 %v305, %v353
    %v355 = vpop.f32.mrf.mxu0
    %v356 = vadd.f32 %v307, %v355
    %357 = vmatmul.bf16.gmra.mxu0 %v158
    %v358 = vpop.f32.mrf.mxu0
    %v359 = vadd.f32 %v310, %v358
    %v360 = vpop.f32.mrf.mxu0
    %v361 = vadd.f32 %v312, %v360
    %362 = vmatmul.bf16.gmra.mxu0 %v160
    %v363 = vpop.f32.mrf.mxu0
    %v364 = vadd.f32 %v315, %v363
    %v365 = vpop.f32.mrf.mxu0
    %v366 = vadd.f32 %v317, %v365
    %367 = vmatmul.bf16.gmra.mxu0 %v162
    %v368 = vpop.f32.mrf.mxu0
    %v369 = vadd.f32 %v320, %v368
    %v370 = vpop.f32.mrf.mxu0
    %v371 = vadd.f32 %v322, %v370
    %372 = vdwg.mxu0
    %v373 = vmax.f32 %v334, 0.0
    %v374 = vmax.f32 %v336, 0.0
    %v375 = vmax.f32 %v339, 0.0
    %v376 = vmax.f32 %v341, 0.0
    %v377 = vmax.f32 %v344, 0.0
    %v378 = vmax.f32 %v346, 0.0
    %v379 = vmax.f32 %v349, 0.0
    %v380 = vmax.f32 %v351, 0.0
    %v381 = vmax.f32 %v354, 0.0
    %v382 = vmax.f32 %v356, 0.0
    %v383 = vmax.f32 %v359, 0.0
    %v384 = vmax.f32 %v361, 0.0
    %v385 = vmax.f32 %v364, 0.0
    %v386 = vmax.f32 %v366, 0.0
    %v387 = vmax.f32 %v369, 0.0
    %v388 = vmax.f32 %v371, 0.0
    %v389 = vpack.c.bf16 %v373, %v373
    %v390 = vpack.c.bf16 %v374, %v374
    %v391 = vpack.c.bf16 %v375, %v375
    %v392 = vpack.c.bf16 %v376, %v376
    %v393 = vpack.c.bf16 %v377, %v377
    %v394 = vpack.c.bf16 %v378, %v378
    %v395 = vpack.c.bf16 %v379, %v379
    %v396 = vpack.c.bf16 %v380, %v380
    %v397 = vpack.c.bf16 %v381, %v381
    %v398 = vpack.c.bf16 %v382, %v382
    %v399 = vpack.c.bf16 %v383, %v383
    %v400 = vpack.c.bf16 %v384, %v384
    %v401 = vpack.c.bf16 %v385, %v385
    %v402 = vpack.c.bf16 %v386, %v386
    %v403 = vpack.c.bf16 %v387, %v387
    %v404 = vpack.c.bf16 %v388, %v388
    %405 = vst [vmem:[#allocation7] sm:$0xf] %v389
    %406 = vst [vmem:[#allocation7 + $0x4] sm:$0xf] %v390
    %407 = vst [vmem:[#allocation7 + $0x8] sm:$0xf] %v391
    %408 = vst [vmem:[#allocation7 + $0xc] sm:$0xf] %v392
    %409 = vst [vmem:[#allocation7 + $0x10] sm:$0xf] %v393
    %410 = vst [vmem:[#allocation7 + $0x14] sm:$0xf] %v394
    %411 = vst [vmem:[#allocation7 + $0x18] sm:$0xf] %v395
    %412 = vst [vmem:[#allocation7 + $0x1c] sm:$0xf] %v396
    %413 = vst [vmem:[#allocation7 + $0x20] sm:$0xf] %v397
    %414 = vst [vmem:[#allocation7 + $0x24] sm:$0xf] %v398
    %415 = vst [vmem:[#allocation7 + $0x28] sm:$0xf] %v399
    %416 = vst [vmem:[#allocation7 + $0x2c] sm:$0xf] %v400
    %417 = vst [vmem:[#allocation7 + $0x30] sm:$0xf] %v401
    %418 = vst [vmem:[#allocation7 + $0x34] sm:$0xf] %v402
    %419 = vst [vmem:[#allocation7 + $0x38] sm:$0xf] %v403
    %420 = vst [vmem:[#allocation7 + $0x3c] sm:$0xf] %v404
    // Predicated region
    $region22: #{tpu_custom_call.1} parent=1 // pred_check
      _
    $region23: #{tpu_custom_call.1} parent=1 // pred_check_branch
      %422 = sbr.rel (0) target = $region25
    $region24: #{tpu_custom_call.1} parent=1 // pred_region
      %424 = vsyncadd [#allocation4], 0
      %s425 = sshll.u32 [#allocation7], 4
      %s426 = int_to_ptr.vmem [resolvable:$true] %s425
      %s427 = sshll.u32 %s3, 4
      %s428 = int_to_ptr.hbm [resolvable:$true] %s427
      %433 = dma.vmem_to_hbm [thread:$0]  %s426, 1024, %s428, [#allocation4], 64, 64, 4
    $region25: #{tpu_custom_call.1} parent=1 // pred_fallthru
      _
    // Predicated region
    $region26: #{tpu_custom_call.1} parent=1 // pred_check
      _
    $region27: #{tpu_custom_call.1} parent=1 // pred_check_branch
      %435 = sbr.rel (0) target = $region29
    $region28: #{tpu_custom_call.1} parent=1 // pred_region
      %437 = dma.done [#allocation4], 1024
    $region29: #{tpu_custom_call.1} parent=1 // pred_fallthru
      _
    %438 = vsyncpa [#allocation3], 1
    %439 = vsyncpa [#allocation6], 1
    %440 = vsyncpa [#allocation4], 1

</llo_original>
